<compile_context>
chip_gen: v6e
topology: v6e:2x2x1
jax: 0.10.0
libtpu: 0.0.40
codegen_flags: <defaults>
</compile_context>

<pallas_src>
import jax
import jax.numpy as jnp
from jax.experimental import pallas as pl
from jax.experimental.pallas import tpu as pltpu

IN_FEATURES = 2
OUT_FEATURES = 1

LANES = 128          # vreg lane width (last dim of every tile)
SUBLANES = 8         # sublane granularity for the second-to-last dim
MAX_TILE_ROWS = 512  # rows of 128 lanes per grid step (256 KiB f32 per input tile)


def _round_up(n, m):
    return (n + m - 1) // m * m


def _linear_kernel(params_ref, x0_ref, x1_ref, o_ref):
    # params_ref: SMEM (3,) f32 -> [w0, w1, b]   (scalar-prefetched)
    # x0_ref, x1_ref, o_ref: VMEM (tile_rows, 128) lane-dense tiles
    w0 = params_ref[0]
    w1 = params_ref[1]
    b = params_ref[2]
    y = x0_ref[...] * w0 + x1_ref[...] * w1 + b
    o_ref[...] = y.astype(o_ref.dtype)


def linear_forward(x, weight, bias):
    """y = x @ weight.T + bias, like torch.nn.Linear(2, 1).

    x:      (B, IN_FEATURES) float32
    weight: (OUT_FEATURES, IN_FEATURES) float32  (PyTorch convention)
    bias:   (OUT_FEATURES,) float32
    returns (B, OUT_FEATURES) float32
    """
    B = x.shape[0]
    x = x.astype(jnp.float32)

    # Lane-dense layout: one (rows_pad, 128) slab per feature column.
    rows = max(_round_up(B, LANES) // LANES, 1)
    tile_rows = min(MAX_TILE_ROWS, _round_up(rows, SUBLANES))
    rows_pad = _round_up(rows, tile_rows)
    total = rows_pad * LANES
    pad = total - B

    x0 = jnp.pad(x[:, 0], (0, pad)).reshape(rows_pad, LANES)
    x1 = jnp.pad(x[:, 1], (0, pad)).reshape(rows_pad, LANES)

    # [w0, w1, b] as 32-bit scalars for SMEM scalar prefetch.
    params = jnp.concatenate(
        [weight.reshape(-1), bias.reshape(-1)]).astype(jnp.float32)

    grid = (rows_pad // tile_rows,)

    y2d = pl.pallas_call(
        _linear_kernel,
        out_shape=jax.ShapeDtypeStruct((rows_pad, LANES), jnp.float32),
        grid_spec=pltpu.PrefetchScalarGridSpec(
            num_scalar_prefetch=1,
            grid=grid,
            in_specs=[
                pl.BlockSpec((tile_rows, LANES), lambda i, params: (i, 0)),
                pl.BlockSpec((tile_rows, LANES), lambda i, params: (i, 0)),
            ],
            out_specs=pl.BlockSpec((tile_rows, LANES), lambda i, params: (i, 0)),
        ),
        compiler_params=pltpu.CompilerParams(
            # Batch tiles are independent -> shardable across v7x's 2 TCs,
            # neutral on v5e/v6e.
            dimension_semantics=("parallel",),
        ),
        cost_estimate=pl.CostEstimate(
            flops=4 * total,            # 2 mul + 2 add per output element
            transcendentals=0,
            bytes_accessed=3 * total * 4 + 12,
        ),
    )(params, x0, x1)

    return y2d.reshape(total)[:B].reshape(B, OUT_FEATURES)


if __name__ == "__main__":
    key = jax.random.PRNGKey(0)
    kx, kw, kb = jax.random.split(key, 3)

    # Deterministic parameters with torch.nn.Linear(2, 1) shapes.
    weight = jax.random.normal(kw, (OUT_FEATURES, IN_FEATURES), dtype=jnp.float32) * 0.5
    bias = jax.random.normal(kb, (OUT_FEATURES,), dtype=jnp.float32) * 0.1

    ok = True
    # B=8   -> smallest path (single padded (8, 128) tile)
    # B=300 -> non-multiple of 128, exercises padding + lane-dense reshape
    for B in (8, 300):
        xb = jax.random.normal(jax.random.fold_in(kx, B), (B, IN_FEATURES),
                               dtype=jnp.float32)
        y = jax.block_until_ready(linear_forward(xb, weight, bias))
        y_ref = xb @ weight.T + bias
        ok = ok and (y.shape == (B, OUT_FEATURES))
        ok = ok and bool(jnp.allclose(y, y_ref, atol=1e-5, rtol=1e-5))

    if ok:
        print("KERNEL_OK")
</pallas_src>

<mosaic_0001>
module attributes {stable_mosaic.version = 11 : i64} {
  func.func @_linear_kernel(%arg0: i32, %arg1: memref<3xf32, #tpu.memory_space<smem>>, %arg2: memref<8x128xf32, #tpu.memory_space<vmem>>, %arg3: memref<8x128xf32, #tpu.memory_space<vmem>>, %arg4: memref<8x128xf32, #tpu.memory_space<vmem>>) attributes {dimension_semantics = [#tpu.dimension_semantics<parallel>], iteration_bounds = array<i64: 1>, scalar_prefetch = 1 : i64, scratch_operands = 0 : i64, tpu.core_type = #tpu.core_type<tc>, window_params = [{transform_indices = @transform_0, window_bounds = array<i64: 8, 128>}, {transform_indices = @transform_1, window_bounds = array<i64: 8, 128>}, {transform_indices = @transform_2, window_bounds = array<i64: 8, 128>}]} {
    %c0 = arith.constant 0 : index
    %0 = memref.load %arg1[%c0] : memref<3xf32, #tpu.memory_space<smem>>
    %c1 = arith.constant 1 : index
    %1 = memref.load %arg1[%c1] : memref<3xf32, #tpu.memory_space<smem>>
    %c2 = arith.constant 2 : index
    %2 = memref.load %arg1[%c2] : memref<3xf32, #tpu.memory_space<smem>>
    %c0_0 = arith.constant 0 : index
    %c0_1 = arith.constant 0 : index
    %3 = vector.load %arg2[%c0_0, %c0_1] : memref<8x128xf32, #tpu.memory_space<vmem>>, vector<8x128xf32>
    %4 = vector.broadcast %0 : f32 to vector<8x128xf32>
    %5 = arith.mulf %3, %4 : vector<8x128xf32>
    %c0_2 = arith.constant 0 : index
    %c0_3 = arith.constant 0 : index
    %6 = vector.load %arg3[%c0_2, %c0_3] : memref<8x128xf32, #tpu.memory_space<vmem>>, vector<8x128xf32>
    %7 = vector.broadcast %1 : f32 to vector<8x128xf32>
    %8 = arith.mulf %6, %7 : vector<8x128xf32>
    %9 = arith.addf %5, %8 : vector<8x128xf32>
    %10 = vector.broadcast %2 : f32 to vector<8x128xf32>
    %11 = arith.addf %9, %10 : vector<8x128xf32>
    %c0_4 = arith.constant 0 : index
    %c0_5 = arith.constant 0 : index
    %12 = vector.load %arg4[%c0_4, %c0_5] : memref<8x128xf32, #tpu.memory_space<vmem>>, vector<8x128xf32>
    tpu.vector_store %arg4[%c0_4, %c0_5], %11 {strides = array<i32>} : memref<8x128xf32, #tpu.memory_space<vmem>>, vector<8x128xf32>,
    return
  }
  func.func @transform_0(%arg0: i32, %arg1: memref<3xf32, #tpu.memory_space<smem>>) -> (i32, i32) {
    %c0_i32 = arith.constant 0 : i32
    %c0_i32_0 = arith.constant 0 : i32
    return %arg0, %c0_i32 : i32, i32
  }
  func.func @transform_1(%arg0: i32, %arg1: memref<3xf32, #tpu.memory_space<smem>>) -> (i32, i32) {
    %c0_i32 = arith.constant 0 : i32
    %c0_i32_0 = arith.constant 0 : i32
    return %arg0, %c0_i32 : i32, i32
  }
  func.func @transform_2(%arg0: i32, %arg1: memref<3xf32, #tpu.memory_space<smem>>) -> (i32, i32) {
    %c0_i32 = arith.constant 0 : i32
    %c0_i32_0 = arith.constant 0 : i32
    return %arg0, %c0_i32 : i32, i32
  }
}

</mosaic_0001>

<llo_original>
// kernel: tpu_custom_call.1
$region0: #{tpu_custom_call.1}
  #allocation0 [shape = 'u32[]', space=smem, size = 0x4, offset = 0x4, fixed_abs, tag = 'smem constant byte address 0x4 - core index']
  #allocation1 [shape = 'u32[144,128]{1,0:T(1,128)}', space=vmem, size = 0x12000, scoped, tag = 'internal scratch']
  #allocation2 [shape = 's32[1]{0}', space=sflag, size = 0x4, scoped, tag = 'scoped memory for tpu_custom_call.1']
  #allocation3 [shape = 'u8[512]{0}', space=smem, size = 0x200, scoped, tag = 'prefetched SMEM operand 0']
  %s0 = inlined_call_operand.hbm [shape: f32[3], index: 0, kind: input, shape index: {}]
  %s1 = inlined_call_operand.hbm [shape: f32[8,128], index: 1, kind: input, shape index: {}]
  %s2 = inlined_call_operand.hbm [shape: f32[8,128], index: 2, kind: input, shape index: {}]
  %s3 = inlined_call_operand.hbm [shape: f32[8,128], index: 3, kind: output, shape index: {}]
  %s4 = sld [smem:[#allocation0]]
  $region26: #{tpu_custom_call.1} parent=0
    _
  %s6 = ssub.s32 1, %s4
  %s7 = scalar_select 0, %s6, %s4
  %9 = dma.hbm_to_smem %s0, 16, [#allocation3], [#allocation2]
  %10 = dma.done [#allocation2], 16
  %11 = sfence
  $region1: #{tpu_custom_call.1} parent=0
    #allocation4 [shape = 'u8[4096]{0}', space=vmem, size = 0x1000, scoped, tag = 'input window, operand 1, single buffered']
    #allocation5 [shape = 's32[1]{0}', space=sflag, size = 0x4, scoped, tag = 'scoped memory for tpu_custom_call.1']
    #allocation6 [shape = 's32[1]{0}', space=sflag, size = 0x4, scoped, tag = 'scoped memory for tpu_custom_call.1']
    #allocation7 [shape = 'u8[4096]{0}', space=vmem, size = 0x1000, scoped, tag = 'input window, operand 2, single buffered']
    #allocation8 [shape = 's32[1]{0}', space=sflag, size = 0x4, scoped, tag = 'scoped memory for tpu_custom_call.1']
    #allocation9 [shape = 'u8[4096]{0}', space=vmem, size = 0x1000, scoped, tag = 'output window, operand 0, single buffered']
    %12 = vsyncpa [#allocation5], 0
    %13 = vsyncpa [#allocation8], 0
    %14 = vsyncpa [#allocation6], 0
    // Predicated region
    $region2: #{tpu_custom_call.1} parent=1 // pred_check
      _
    $region3: #{tpu_custom_call.1} parent=1 // pred_check_branch
      %16 = sbr.rel (0) target = $region5
    $region4: #{tpu_custom_call.1} parent=1 // pred_region
      %s18 = ssub.s32 128, 128
      %19 = vsyncadd [#allocation5], %s18
      %s21 = sshll.u32 [#allocation4], 4
      %s22 = int_to_ptr.vmem [resolvable:$true] %s21
      %24 = dma.hbm_to_vmem [thread:$0]  %s1, 128, %s22, [#allocation5]
    $region5: #{tpu_custom_call.1} parent=1 // pred_fallthru
      _
    // Predicated region
    $region6: #{tpu_custom_call.1} parent=1 // pred_check
      _
    $region7: #{tpu_custom_call.1} parent=1 // pred_check_branch
      %26 = sbr.rel (0) target = $region9
    $region8: #{tpu_custom_call.1} parent=1 // pred_region
      %s28 = ssub.s32 128, 128
      %29 = vsyncadd [#allocation8], %s28
      %s31 = sshll.u32 [#allocation7], 4
      %s32 = int_to_ptr.vmem [resolvable:$true] %s31
      %34 = dma.hbm_to_vmem [thread:$0]  %s2, 128, %s32, [#allocation8]
    $region9: #{tpu_custom_call.1} parent=1 // pred_fallthru
      _
    // Predicated region
    $region10: #{tpu_custom_call.1} parent=1 // pred_check
      _
    $region11: #{tpu_custom_call.1} parent=1 // pred_check_branch
      %36 = sbr.rel (0) target = $region13
    $region12: #{tpu_custom_call.1} parent=1 // pred_region
      %37 = dma.done [#allocation5], 128
    $region13: #{tpu_custom_call.1} parent=1 // pred_fallthru
      _
    // Predicated region
    $region14: #{tpu_custom_call.1} parent=1 // pred_check
      _
    $region15: #{tpu_custom_call.1} parent=1 // pred_check_branch
      %39 = sbr.rel (0) target = $region17
    $region16: #{tpu_custom_call.1} parent=1 // pred_region
      %40 = dma.done [#allocation8], 128
    $region17: #{tpu_custom_call.1} parent=1 // pred_fallthru
      _
    %s41 = sld [smem:[#allocation3]]
    %s42 = sld [smem:[#allocation3 + $0x1]]
    %s43 = sld [smem:[#allocation3 + $0x2]]
    %v44 = vld [vmem:[#allocation4] sm:$0xff]
    %v45 = vstv %s41
    %v46 = vmul.f32 %v44, %v45
    %v47 = vld [vmem:[#allocation7] sm:$0xff]
    %v48 = vstv %s42
    %v49 = vmul.f32 %v47, %v48
    %v50 = vadd.f32 %v46, %v49
    %v51 = vstv %s43
    %v52 = vadd.f32 %v50, %v51
    %53 = vst [vmem:[#allocation9] sm:$0xff] %v52
    // Predicated region
    $region18: #{tpu_custom_call.1} parent=1 // pred_check
      _
    $region19: #{tpu_custom_call.1} parent=1 // pred_check_branch
      %55 = sbr.rel (0) target = $region21
    $region20: #{tpu_custom_call.1} parent=1 // pred_region
      %s57 = ssub.s32 128, 128
      %58 = vsyncadd [#allocation6], %s57
      %s60 = sshll.u32 [#allocation9], 4
      %s61 = int_to_ptr.vmem [resolvable:$true] %s60
      %63 = dma.vmem_to_hbm [thread:$0]  %s61, 128, %s3, [#allocation6]
    $region21: #{tpu_custom_call.1} parent=1 // pred_fallthru
      _
    // Predicated region
    $region22: #{tpu_custom_call.1} parent=1 // pred_check
      _
    $region23: #{tpu_custom_call.1} parent=1 // pred_check_branch
      %65 = sbr.rel (0) target = $region25
    $region24: #{tpu_custom_call.1} parent=1 // pred_region
      %66 = dma.done [#allocation6], 128
    $region25: #{tpu_custom_call.1} parent=1 // pred_fallthru
      _
    %67 = vsyncpa [#allocation5], 1
    %68 = vsyncpa [#allocation8], 1
    %69 = vsyncpa [#allocation6], 1

</llo_original>
